<compile_context>
chip_gen: v7x
topology: tpu7x:2x2x1
jax: 0.10.0
libtpu: 0.0.40
codegen_flags: <defaults>
</compile_context>

<pallas_src>
import functools

import jax
import jax.numpy as jnp
import numpy as np
from jax.experimental import pallas as pl
from jax.experimental.pallas import tpu as pltpu

BN_EPS = 1e-5
_VMEM_LIMIT = 48 * 1024 * 1024   # < v7x 64 MiB physical, > v5e/v6e scoped defaults


def _round_up(a, b):
    return ((a + b - 1) // b) * b


# ---------------------------------------------------------------------------
# Kernels
# ---------------------------------------------------------------------------
def _msfe_stats_kernel(x3_ref, w_ref, sum_ref, sumsq_ref):
    """Accumulate per-lane sum / sum-of-squares of y = X3 @ W (no conv bias:
    it cancels inside training-mode BatchNorm).  Grid = (core, step); one
    accumulator slab per core, initialized on that core's first step."""
    @pl.when(pl.program_id(1) == 0)
    def _():
        sum_ref[...] = jnp.zeros_like(sum_ref)
        sumsq_ref[...] = jnp.zeros_like(sumsq_ref)

    y = jnp.dot(x3_ref[...], w_ref[...], preferred_element_type=jnp.float32)
    sum_ref[...] += jnp.sum(y, axis=0, keepdims=True)[None]
    sumsq_ref[...] += jnp.sum(y * y, axis=0, keepdims=True)[None]


def _msfe_norm_kernel(x3_ref, w_ref, scale_ref, shift_ref, o_ref):
    """Recompute y and apply BN scale/shift.  Scale is kept separate from W
    (instead of folding) to preserve matmul rounding correlation with the
    reference path; pass 2 is mem-bound so the extra multiply is free filler."""
    y = jnp.dot(x3_ref[...], w_ref[...], preferred_element_type=jnp.float32)
    o_ref[...] = (y * scale_ref[...] + shift_ref[...]).astype(o_ref.dtype)


# ---------------------------------------------------------------------------
# Wrapper
# ---------------------------------------------------------------------------
@functools.partial(jax.jit, static_argnames=("tile_rows",))
def multi_scale_feature_extractor(x, params, *, tile_rows=None):
    """x: (N, in_dim) float32 -> (N, out_dim) float32 (training-mode BN)."""
    n, cin = x.shape
    out_dim = params["gamma"].shape[-1]
    half = out_dim // 2
    ck = 3 * cin

    # Lane packing: LP consecutive points share one 128-lane output row; packed
    # width padded up to a multiple of 128 so stores are always unmasked.
    lp = 128 // out_dim if (out_dim <= 128 and 128 % out_dim == 0) else 1
    pw_data = lp * out_dim
    pw = _round_up(pw_data, 128)
    kk = lp * ck

    # ---- tiling: large tiles to amortize the ~0.35us per-grid-step cost ----
    np_min = -(-n // lp)                                   # packed rows needed
    tm = tile_rows if tile_rows is not None else min(4096, _round_up(np_min, 8))
    assert tm % 8 == 0, "tile_rows must be a multiple of 8"
    steps = -(-np_min // (2 * tm))                         # pass-1 steps per core
    n_rows = 2 * steps * tm                                # packed rows (padded)
    n_pad = n_rows * lp                                    # padded point count

    # ---- fused conv weights:  y = X3 @ W_comb  (bias handled analytically) ----
    w_comb = jnp.zeros((ck, out_dim), jnp.float32)
    w_comb = w_comb.at[cin:2 * cin, :half].set(params["w1"])      # conv1 (center)
    w_comb = w_comb.at[0:cin, half:].set(params["w2"][0])          # conv2 tap -1
    w_comb = w_comb.at[cin:2 * cin, half:].set(params["w2"][1])    # conv2 tap  0
    w_comb = w_comb.at[2 * cin:, half:].set(params["w2"][2])       # conv2 tap +1
    w_block = jnp.zeros((kk, pw), jnp.float32)
    w_block = w_block.at[:, :pw_data].set(
        jnp.kron(jnp.eye(lp, dtype=jnp.float32), w_comb))          # (kk, pw)

    # ---- halo + packing: one fused XLA producer under jit ----
    zero_row = jnp.zeros((1, cin), x.dtype)
    x_prev = jnp.concatenate([zero_row, x[:-1]], axis=0)
    x_next = jnp.concatenate([x[1:], zero_row], axis=0)
    x3 = jnp.concatenate([x_prev, x, x_next], axis=1).astype(jnp.float32)
    x3 = jnp.pad(x3, ((0, n_pad - n), (0, 0)))
    x3p = x3.reshape(n_rows, kk)

    # ---- pass 1: per-lane sum / sumsq of y, one accumulator per core ----
    acc_spec = pl.BlockSpec((1, 1, pw), lambda c, i: (c, 0, 0))
    sums, sumsqs = pl.pallas_call(
        _msfe_stats_kernel,
        out_shape=(jax.ShapeDtypeStruct((2, 1, pw), jnp.float32),
                   jax.ShapeDtypeStruct((2, 1, pw), jnp.float32)),
        grid=(2, steps),
        in_specs=[pl.BlockSpec((tm, kk), lambda c, i: (c * steps + i, 0)),
                  pl.BlockSpec((kk, pw), lambda c, i: (0, 0))],
        out_specs=(acc_spec, acc_spec),
        compiler_params=pltpu.CompilerParams(
            dimension_semantics=("parallel", "arbitrary"),
            vmem_limit_bytes=_VMEM_LIMIT),
        cost_estimate=pl.CostEstimate(
            flops=2 * n_rows * kk * pw + 3 * n_rows * pw,
            transcendentals=0,
            bytes_accessed=4 * (n_rows * kk + kk * pw + 4 * pw)),
    )(x3p, w_block)

    # ---- finalize batch statistics on tiny vectors ----
    # Padded rows have X3 == 0 (and no bias), so they contribute exactly zero.
    ch_sum = jnp.sum(sums, axis=(0, 1))[:pw_data].reshape(lp, out_dim).sum(0)
    ch_sumsq = jnp.sum(sumsqs, axis=(0, 1))[:pw_data].reshape(lp, out_dim).sum(0)
    mean = ch_sum / n
    # NOTE: single-pass E[y^2]-E[y]^2 in f32 (clamped); adequate at these scales.
    var = jnp.maximum(ch_sumsq / n - mean * mean, 0.0)
    gamma = params["gamma"].reshape(-1)
    beta = params["beta"].reshape(-1)
    scale = gamma * jax.lax.rsqrt(var + BN_EPS)
    # Conv bias b shifts y and its batch mean identically, so it cancels in
    # training-mode BN:  (y + b) - mean(y + b) = y - mean(y).
    shift = beta - mean * scale
    scale_pw = jnp.zeros((1, pw), jnp.float32).at[:, :pw_data].set(
        jnp.tile(scale[None, :], (1, lp)))
    shift_pw = jnp.zeros((1, pw), jnp.float32).at[:, :pw_data].set(
        jnp.tile(shift[None, :], (1, lp)))

    # ---- pass 2: recompute y, normalize, lane-dense store ----
    out_p = pl.pallas_call(
        _msfe_norm_kernel,
        out_shape=jax.ShapeDtypeStruct((n_rows, pw), jnp.float32),
        grid=(n_rows // tm,),
        in_specs=[pl.BlockSpec((tm, kk), lambda i: (i, 0)),
                  pl.BlockSpec((kk, pw), lambda i: (0, 0)),
                  pl.BlockSpec((1, pw), lambda i: (0, 0)),
                  pl.BlockSpec((1, pw), lambda i: (0, 0))],
        out_specs=pl.BlockSpec((tm, pw), lambda i: (i, 0)),
        compiler_params=pltpu.CompilerParams(
            dimension_semantics=("parallel",),
            vmem_limit_bytes=_VMEM_LIMIT),
        cost_estimate=pl.CostEstimate(
            flops=2 * n_rows * kk * pw + 2 * n_rows * pw,
            transcendentals=0,
            bytes_accessed=4 * (n_rows * kk + n_rows * pw + kk * pw + 2 * pw)),
    )(x3p, w_block, scale_pw, shift_pw)

    # Lane-dense (n_rows, pw) -> (n_pad, out_dim) row-major; drop pad rows/cols.
    # TODO(synk): consumers inside the same jit could take the padded slab to
    # avoid the copy these slices cost when they cannot fuse.
    return out_p[:, :pw_data].reshape(n_pad, out_dim)[:n]


# ---------------------------------------------------------------------------
# Params / reference
# ---------------------------------------------------------------------------
def init_params(key, in_dim, out_dim):
    half = out_dim // 2
    k1, k2, k3, k4 = jax.random.split(key, 4)
    # PyTorch conv1 weight (half, Cin, 1) -> stored as (Cin, half)
    w1 = 0.1 * jax.random.normal(k1, (in_dim, half), jnp.float32)
    b1 = 0.1 * jax.random.normal(k2, (1, half), jnp.float32)
    # PyTorch conv2 weight (half, Cin, 3) -> stored tap-major as (3, Cin, half)
    w2 = 0.1 * jax.random.normal(k3, (3, in_dim, half), jnp.float32)
    b2 = 0.1 * jax.random.normal(k4, (1, half), jnp.float32)
    # BatchNorm1d default init: gamma=1, beta=0
    gamma = jnp.ones((1, out_dim), jnp.float32)
    beta = jnp.zeros((1, out_dim), jnp.float32)
    return dict(w1=w1, b1=b1, w2=w2, b2=b2, gamma=gamma, beta=beta)


def reference(x, p):
    """Pure-JAX reference mirroring the PyTorch forward (training-mode BN)."""
    y1 = x @ p["w1"] + p["b1"]
    xp = jnp.pad(x, ((1, 1), (0, 0)))
    y2 = (xp[:-2] @ p["w2"][0] + xp[1:-1] @ p["w2"][1] + xp[2:] @ p["w2"][2]
          + p["b2"])
    y = jnp.concatenate([y1, y2], axis=1)
    mean = y.mean(0, keepdims=True)
    var = ((y - mean) ** 2).mean(0, keepdims=True)
    return (y - mean) * jax.lax.rsqrt(var + BN_EPS) * p["gamma"] + p["beta"]


if __name__ == "__main__":
    # Small but non-trivial: exercises lane packing (128/32 = 4 points per row),
    # a multi-step two-core grid for pass 1, and heavy row padding.
    N, IN_DIM, OUT_DIM = 100, 4, 32
    key = jax.random.PRNGKey(0)
    kx, kp = jax.random.split(key)
    x = jax.random.normal(kx, (N, IN_DIM), jnp.float32)
    params = init_params(kp, IN_DIM, OUT_DIM)

    ref = jax.block_until_ready(reference(x, params))

    # Small-tile path: pass-1 grid (2, 2), pass-2 grid (4,).
    out = jax.block_until_ready(
        multi_scale_feature_extractor(x, params, tile_rows=8))
    assert out.shape == (N, OUT_DIM) and out.dtype == jnp.float32
    np.testing.assert_allclose(np.asarray(out), np.asarray(ref),
                               rtol=1e-4, atol=1e-4)

    # Default (large-tile) path.
    out2 = jax.block_until_ready(multi_scale_feature_extractor(x, params))
    np.testing.assert_allclose(np.asarray(out2), np.asarray(ref),
                               rtol=1e-4, atol=1e-4)

    print("KERNEL_OK")
</pallas_src>

<mosaic_0001>
module attributes {stable_mosaic.version = 11 : i64} {
  func.func @_msfe_stats_kernel(%arg0: i32, %arg1: i32, %arg2: memref<8x48xf32, #tpu.memory_space<vmem>>, %arg3: memref<48x128xf32, #tpu.memory_space<vmem>>, %arg4: memref<1x1x128xf32, #tpu.memory_space<vmem>>, %arg5: memref<1x1x128xf32, #tpu.memory_space<vmem>>) attributes {dimension_semantics = [#tpu.dimension_semantics<parallel>, #tpu.dimension_semantics<arbitrary>], iteration_bounds = array<i64: 2, 2>, scalar_prefetch = 0 : i64, scratch_operands = 0 : i64, tpu.core_type = #tpu.core_type<tc>, window_params = [{transform_indices = @transform_0, window_bounds = array<i64: 8, 48>}, {pipeline_mode = #tpu.pipeline_mode<synchronous>, transform_indices = @transform_1, window_bounds = array<i64: 48, 128>}, {transform_indices = @transform_2, window_bounds = array<i64: 1, 1, 128>}, {transform_indices = @transform_3, window_bounds = array<i64: 1, 1, 128>}]} {
    %c0_i32 = arith.constant 0 : i32
    %0 = arith.cmpi eq, %arg1, %c0_i32 : i32
    %1 = arith.extui %0 : i1 to i32
    %c0_i32_0 = arith.constant 0 : i32
    %2 = arith.cmpi ne, %1, %c0_i32_0 : i32
    scf.if %2 {
      %cst_18 = arith.constant 0.000000e+00 : f32
      %19 = vector.broadcast %cst_18 : f32 to vector<1x1x128xf32>
      %c0_19 = arith.constant 0 : index
      %c0_20 = arith.constant 0 : index
      %c0_21 = arith.constant 0 : index
      %20 = vector.load %arg4[%c0_19, %c0_20, %c0_21] : memref<1x1x128xf32, #tpu.memory_space<vmem>>, vector<1x1x128xf32>
      tpu.vector_store %arg4[%c0_19, %c0_20, %c0_21], %19 {strides = array<i32>} : memref<1x1x128xf32, #tpu.memory_space<vmem>>, vector<1x1x128xf32>,
      %cst_22 = arith.constant 0.000000e+00 : f32
      %21 = vector.broadcast %cst_22 : f32 to vector<1x1x128xf32>
      %c0_23 = arith.constant 0 : index
      %c0_24 = arith.constant 0 : index
      %c0_25 = arith.constant 0 : index
      %22 = vector.load %arg5[%c0_23, %c0_24, %c0_25] : memref<1x1x128xf32, #tpu.memory_space<vmem>>, vector<1x1x128xf32>
      tpu.vector_store %arg5[%c0_23, %c0_24, %c0_25], %21 {strides = array<i32>} : memref<1x1x128xf32, #tpu.memory_space<vmem>>, vector<1x1x128xf32>,
    } else {
    }
    %c0 = arith.constant 0 : index
    %c0_1 = arith.constant 0 : index
    %3 = vector.load %arg2[%c0, %c0_1] : memref<8x48xf32, #tpu.memory_space<vmem>>, vector<8x48xf32>
    %c0_2 = arith.constant 0 : index
    %c0_3 = arith.constant 0 : index
    %4 = vector.load %arg3[%c0_2, %c0_3] : memref<48x128xf32, #tpu.memory_space<vmem>>, vector<48x128xf32>
    %cst = arith.constant dense<0.000000e+00> : vector<8x128xf32>
    %5 = tpu.matmul %3, %4, %cst {dimension_numbers = #tpu.dot_dimension_numbers<[1], [0], [0], [1], [0, 0, 1, 1], [], []>} : vector<8x48xf32>, vector<48x128xf32>, vector<8x128xf32> -> vector<8x128xf32>
    %c0_4 = arith.constant 0 : index
    %c0_5 = arith.constant 0 : index
    %c0_6 = arith.constant 0 : index
    %6 = vector.load %arg4[%c0_4, %c0_5, %c0_6] : memref<1x1x128xf32, #tpu.memory_space<vmem>>, vector<1x1x128xf32>
    %cst_7 = arith.constant dense<0.000000e+00> : vector<128xf32>
    %7 = vector.multi_reduction <add>, %5, %cst_7 [0] : vector<8x128xf32> to vector<128xf32>
    %8 = vector.shape_cast %7 : vector<128xf32> to vector<1x128xf32>
    %9 = vector.shape_cast %8 : vector<1x128xf32> to vector<1x1x128xf32>
    %10 = arith.addf %6, %9 : vector<1x1x128xf32>
    %c0_8 = arith.constant 0 : index
    %c0_9 = arith.constant 0 : index
    %c0_10 = arith.constant 0 : index
    %11 = vector.load %arg4[%c0_8, %c0_9, %c0_10] : memref<1x1x128xf32, #tpu.memory_space<vmem>>, vector<1x1x128xf32>
    tpu.vector_store %arg4[%c0_8, %c0_9, %c0_10], %10 {strides = array<i32>} : memref<1x1x128xf32, #tpu.memory_space<vmem>>, vector<1x1x128xf32>,
    %c0_11 = arith.constant 0 : index
    %c0_12 = arith.constant 0 : index
    %c0_13 = arith.constant 0 : index
    %12 = vector.load %arg5[%c0_11, %c0_12, %c0_13] : memref<1x1x128xf32, #tpu.memory_space<vmem>>, vector<1x1x128xf32>
    %13 = arith.mulf %5, %5 : vector<8x128xf32>
    %cst_14 = arith.constant dense<0.000000e+00> : vector<128xf32>
    %14 = vector.multi_reduction <add>, %13, %cst_14 [0] : vector<8x128xf32> to vector<128xf32>
    %15 = vector.shape_cast %14 : vector<128xf32> to vector<1x128xf32>
    %16 = vector.shape_cast %15 : vector<1x128xf32> to vector<1x1x128xf32>
    %17 = arith.addf %12, %16 : vector<1x1x128xf32>
    %c0_15 = arith.constant 0 : index
    %c0_16 = arith.constant 0 : index
    %c0_17 = arith.constant 0 : index
    %18 = vector.load %arg5[%c0_15, %c0_16, %c0_17] : memref<1x1x128xf32, #tpu.memory_space<vmem>>, vector<1x1x128xf32>
    tpu.vector_store %arg5[%c0_15, %c0_16, %c0_17], %17 {strides = array<i32>} : memref<1x1x128xf32, #tpu.memory_space<vmem>>, vector<1x1x128xf32>,
    return
  }
  func.func @transform_0(%arg0: i32, %arg1: i32) -> (i32, i32) {
    %c2_i32 = arith.constant 2 : i32
    %0 = arith.muli %arg0, %c2_i32 : i32
    %1 = arith.addi %0, %arg1 : i32
    %c0_i32 = arith.constant 0 : i32
    %c0_i32_0 = arith.constant 0 : i32
    return %1, %c0_i32 : i32, i32
  }
  func.func @transform_1(%arg0: i32, %arg1: i32) -> (i32, i32) {
    %c0_i32 = arith.constant 0 : i32
    %c0_i32_0 = arith.constant 0 : i32
    %c0_i32_1 = arith.constant 0 : i32
    return %c0_i32, %c0_i32_0 : i32, i32
  }
  func.func @transform_2(%arg0: i32, %arg1: i32) -> (i32, i32, i32) {
    %c0_i32 = arith.constant 0 : i32
    %c0_i32_0 = arith.constant 0 : i32
    %c0_i32_1 = arith.constant 0 : i32
    return %arg0, %c0_i32, %c0_i32_0 : i32, i32, i32
  }
  func.func @transform_3(%arg0: i32, %arg1: i32) -> (i32, i32, i32) {
    %c0_i32 = arith.constant 0 : i32
    %c0_i32_0 = arith.constant 0 : i32
    %c0_i32_1 = arith.constant 0 : i32
    return %arg0, %c0_i32, %c0_i32_0 : i32, i32, i32
  }
}

module attributes {stable_mosaic.version = 11 : i64} {
  func.func @_msfe_norm_kernel(%arg0: i32, %arg1: memref<8x48xf32, #tpu.memory_space<vmem>>, %arg2: memref<48x128xf32, #tpu.memory_space<vmem>>, %arg3: memref<1x128xf32, #tpu.memory_space<vmem>>, %arg4: memref<1x128xf32, #tpu.memory_space<vmem>>, %arg5: memref<8x128xf32, #tpu.memory_space<vmem>>) attributes {dimension_semantics = [#tpu.dimension_semantics<parallel>], iteration_bounds = array<i64: 4>, scalar_prefetch = 0 : i64, scratch_operands = 0 : i64, tpu.core_type = #tpu.core_type<tc>, window_params = [{transform_indices = @transform_0, window_bounds = array<i64: 8, 48>}, {pipeline_mode = #tpu.pipeline_mode<synchronous>, transform_indices = @transform_1, window_bounds = array<i64: 48, 128>}, {pipeline_mode = #tpu.pipeline_mode<synchronous>, transform_indices = @transform_2, window_bounds = array<i64: 1, 128>}, {pipeline_mode = #tpu.pipeline_mode<synchronous>, transform_indices = @transform_3, window_bounds = array<i64: 1, 128>}, {transform_indices = @transform_4, window_bounds = array<i64: 8, 128>}]} {
    %c0 = arith.constant 0 : index
    %c0_0 = arith.constant 0 : index
    %0 = vector.load %arg1[%c0, %c0_0] : memref<8x48xf32, #tpu.memory_space<vmem>>, vector<8x48xf32>
    %c0_1 = arith.constant 0 : index
    %c0_2 = arith.constant 0 : index
    %1 = vector.load %arg2[%c0_1, %c0_2] : memref<48x128xf32, #tpu.memory_space<vmem>>, vector<48x128xf32>
    %cst = arith.constant dense<0.000000e+00> : vector<8x128xf32>
    %2 = tpu.matmul %0, %1, %cst {dimension_numbers = #tpu.dot_dimension_numbers<[1], [0], [0], [1], [0, 0, 1, 1], [], []>} : vector<8x48xf32>, vector<48x128xf32>, vector<8x128xf32> -> vector<8x128xf32>
    %c0_3 = arith.constant 0 : index
    %c0_4 = arith.constant 0 : index
    %3 = vector.load %arg3[%c0_3, %c0_4] : memref<1x128xf32, #tpu.memory_space<vmem>>, vector<1x128xf32>
    %4 = vector.broadcast %3 : vector<1x128xf32> to vector<8x128xf32>
    %5 = arith.mulf %2, %4 : vector<8x128xf32>
    %c0_5 = arith.constant 0 : index
    %c0_6 = arith.constant 0 : index
    %6 = vector.load %arg4[%c0_5, %c0_6] : memref<1x128xf32, #tpu.memory_space<vmem>>, vector<1x128xf32>
    %7 = vector.broadcast %6 : vector<1x128xf32> to vector<8x128xf32>
    %8 = arith.addf %5, %7 : vector<8x128xf32>
    %c0_7 = arith.constant 0 : index
    %c0_8 = arith.constant 0 : index
    %9 = vector.load %arg5[%c0_7, %c0_8] : memref<8x128xf32, #tpu.memory_space<vmem>>, vector<8x128xf32>
    tpu.vector_store %arg5[%c0_7, %c0_8], %8 {strides = array<i32>} : memref<8x128xf32, #tpu.memory_space<vmem>>, vector<8x128xf32>,
    return
  }
  func.func @transform_0(%arg0: i32) -> (i32, i32) {
    %c0_i32 = arith.constant 0 : i32
    %c0_i32_0 = arith.constant 0 : i32
    return %arg0, %c0_i32 : i32, i32
  }
  func.func @transform_1(%arg0: i32) -> (i32, i32) {
    %c0_i32 = arith.constant 0 : i32
    %c0_i32_0 = arith.constant 0 : i32
    %c0_i32_1 = arith.constant 0 : i32
    return %c0_i32, %c0_i32_0 : i32, i32
  }
  func.func @transform_2(%arg0: i32) -> (i32, i32) {
    %c0_i32 = arith.constant 0 : i32
    %c0_i32_0 = arith.constant 0 : i32
    %c0_i32_1 = arith.constant 0 : i32
    return %c0_i32, %c0_i32_0 : i32, i32
  }
  func.func @transform_3(%arg0: i32) -> (i32, i32) {
    %c0_i32 = arith.constant 0 : i32
    %c0_i32_0 = arith.constant 0 : i32
    %c0_i32_1 = arith.constant 0 : i32
    return %c0_i32, %c0_i32_0 : i32, i32
  }
  func.func @transform_4(%arg0: i32) -> (i32, i32) {
    %c0_i32 = arith.constant 0 : i32
    %c0_i32_0 = arith.constant 0 : i32
    return %arg0, %c0_i32 : i32, i32
  }
}

</mosaic_0001>

<llo_original>
// kernel: multi_scale_feature_extractor.2
$region0: #{multi_scale_feature_extractor.2}
  #allocation0 [shape = 'u32[]', space=smem, size = 0x4, offset = 0x4, fixed_abs, tag = 'smem constant byte address 0x4 - core index']
  #allocation1 [shape = 'u32[144,128]{1,0:T(1,128)}', space=vmem, size = 0x12000, scoped, tag = 'internal scratch']
  %s0 = inlined_call_operand.vmem [shape: f32[32,48], index: 0, kind: input, shape index: {}]
  %s1 = inlined_call_operand.vmem [shape: f32[48,128], index: 1, kind: input, shape index: {}]
  %s2 = inlined_call_operand.vmem [shape: f32[2,1,128], index: 2, kind: output, shape index: {0}]
  %s3 = inlined_call_operand.vmem [shape: f32[2,1,128], index: 3, kind: output, shape index: {1}]
  %4 = xla_tuple %s2, %s3
  %s5 = sld [smem:[#allocation0]]
  $region53: #{multi_scale_feature_extractor.2} parent=0
    _
  %s7 = ssub.s32 1, %s5
  %s8 = scalar_select 0, %s7, %s5
  loop: start=0, step=1, limit=6
  $region2: #{multi_scale_feature_extractor.2} parent=0 // loop_pre_header
    _
  $region3: #{multi_scale_feature_extractor.2} parent=0 // loop_header
    %s10 = sphi 0, %s14
    %p11 = scmp.ge.s32.totalorder %s10, 6
    %s17 = sphi 0, %s29
    %s18 = sphi 0, %s25
    %s19 = sphi 0, %s17
    %s20 = sphi 0, %s18
    %s21 = sphi 0, %s19
    %s22 = sphi 0, %s20
    %s36 = sphi 0, %s38
    %s39 = sphi 0, %s36
    %s40 = sphi 0, %s39
    %s56 = sphi 0, %s40
    %s60 = sphi 0, %s60
    %s62 = sphi 0, %s60
    %s63 = sphi 0, %s62
    %s77 = sphi 0, %s63
    %s83 = sphi 0, %s85
    %s86 = sphi 0, %s83
    %s87 = sphi 0, %s86
    %s103 = sphi 0, %s87
    %s109 = sphi 0, %s111
    %s112 = sphi 0, %s109
    %s113 = sphi 0, %s112
    %s129 = sphi 0, %s113
  $region4: #{multi_scale_feature_extractor.2} parent=0 // loop_header_branch
    %13 = sbr.rel (%p11) target = $region8
  $region5: #{multi_scale_feature_extractor.2} parent=0 // loop_body
    %s15 = ssub.s32 %s10, 1
    %s16 = ssub.s32 %s10, 2
    %s23 = sadd.s32 1, %s18
    %p24 = scmp.ge.s32.totalorder %s23, 2
    %s25 = scalar_select %p24, 0, %s23
    %s26 = sadd.s32 1, %s17
    %s27 = scalar_select %p24, %s26, %s17
    %p28 = scmp.ge.s32.totalorder %s27, 2
    %s29 = scalar_select %p28, 0, %s27
    %s30 = smul.u32 %s17, 2
    %s31 = sadd.s32 %s30, %s18
    %s32 = smul.u32 %s29, 2
    %s33 = sadd.s32 %s32, %s25
    %s34 = ssub.s32 %s31, %s33
    %p35 = scmp.eq.s32.totalorder %s34, 0
    %s37 = sadd.s32 %s36, 1
    %s38 = scalar_select %p35, %s36, %s37
    %p41 = pneg %p35
    %p42 = scmp.eq.s32.totalorder %s10, 3
    %p43 = por %p41, %p42
    %p44 = scmp.ne.s32.totalorder %s36, %s39
    %p45 = scmp.eq.s32.totalorder %s10, 0
    %p46 = por %p44, %p45
    %p47 = scmp.ne.s32.totalorder %s36, %s39
    %p48 = scmp.eq.s32.totalorder %s15, 3
    %p49 = por %p47, %p48
    %p50 = scmp.ne.s32.totalorder %s39, %s40
    %p51 = scmp.eq.s32.totalorder %s15, 0
    %p52 = por %p50, %p51
    %p53 = scmp.ne.s32.totalorder %s39, %s40
    %p54 = scmp.eq.s32.totalorder %s16, 3
    %p55 = por %p53, %p54
    %p57 = scmp.ne.s32.totalorder %s40, %s56
    %p58 = scmp.eq.s32.totalorder %s16, 0
    %p59 = por %p57, %p58
    %s61 = sadd.s32 %s60, 1
    %p64 = scmp.eq.s32.totalorder %s10, 3
    %p65 = scmp.ne.s32.totalorder %s60, %s62
    %p66 = scmp.eq.s32.totalorder %s10, 0
    %p67 = por %p65, %p66
    %p68 = scmp.ne.s32.totalorder %s60, %s62
    %p69 = scmp.eq.s32.totalorder %s15, 3
    %p70 = por %p68, %p69
    %p71 = scmp.ne.s32.totalorder %s62, %s63
    %p72 = scmp.eq.s32.totalorder %s15, 0
    %p73 = por %p71, %p72
    %p74 = scmp.ne.s32.totalorder %s62, %s63
    %p75 = scmp.eq.s32.totalorder %s16, 3
    %p76 = por %p74, %p75
    %p78 = scmp.ne.s32.totalorder %s63, %s77
    %p79 = scmp.eq.s32.totalorder %s16, 0
    %p80 = por %p78, %p79
    %s81 = ssub.s32 %s17, %s29
    %p82 = scmp.eq.s32.totalorder %s81, 0
    %s84 = sadd.s32 %s83, 1
    %s85 = scalar_select %p82, %s83, %s84
    %p88 = pneg %p82
    %p89 = scmp.eq.s32.totalorder %s10, 3
    %p90 = por %p88, %p89
    %p91 = scmp.ne.s32.totalorder %s83, %s86
    %p92 = scmp.eq.s32.totalorder %s10, 0
    %p93 = por %p91, %p92
    %p94 = scmp.ne.s32.totalorder %s83, %s86
    %p95 = scmp.eq.s32.totalorder %s15, 3
    %p96 = por %p94, %p95
    %p97 = scmp.ne.s32.totalorder %s86, %s87
    %p98 = scmp.eq.s32.totalorder %s15, 0
    %p99 = por %p97, %p98
    %p100 = scmp.ne.s32.totalorder %s86, %s87
    %p101 = scmp.eq.s32.totalorder %s16, 3
    %p102 = por %p100, %p101
    %p104 = scmp.ne.s32.totalorder %s87, %s103
    %p105 = scmp.eq.s32.totalorder %s16, 0
    %p106 = por %p104, %p105
    %s107 = ssub.s32 %s17, %s29
    %p108 = scmp.eq.s32.totalorder %s107, 0
    %s110 = sadd.s32 %s109, 1
    %s111 = scalar_select %p108, %s109, %s110
    %p114 = pneg %p108
    %p115 = scmp.eq.s32.totalorder %s10, 3
    %p116 = por %p114, %p115
    %p117 = scmp.ne.s32.totalorder %s109, %s112
    %p118 = scmp.eq.s32.totalorder %s10, 0
    %p119 = por %p117, %p118
    %p120 = scmp.ne.s32.totalorder %s109, %s112
    %p121 = scmp.eq.s32.totalorder %s15, 3
    %p122 = por %p120, %p121
    %p123 = scmp.ne.s32.totalorder %s112, %s113
    %p124 = scmp.eq.s32.totalorder %s15, 0
    %p125 = por %p123, %p124
    %p126 = scmp.ne.s32.totalorder %s112, %s113
    %p127 = scmp.eq.s32.totalorder %s16, 3
    %p128 = por %p126, %p127
    %p130 = scmp.ne.s32.totalorder %s113, %s129
    %p131 = scmp.eq.s32.totalorder %s16, 0
    %p132 = por %p130, %p131
    %p133 = scmp.le.s32.totalorder 1, %s10
    %p134 = scmp.lt.s32.totalorder %s10, 5
    %p135 = pnand %p133, %p134
    %p136 = pneg %p135
    // Predicated region
    $region9: #{multi_scale_feature_extractor.2} parent=5 // pred_check
      _
    $region10: #{multi_scale_feature_extractor.2} parent=5 // pred_check_branch
      %138 = sbr.rel (%p135) target = $region12
    $region11: #{multi_scale_feature_extractor.2} parent=5 // pred_region
      %s139 = ssub.s32 %s10, 1
      // Predicated region
      $region13: #{multi_scale_feature_extractor.2} parent=11 // pred_check
        %p140 = pneg %p73
      $region14: #{multi_scale_feature_extractor.2} parent=11 // pred_check_branch
        %142 = sbr.rel (%p140) target = $region16
      $region15: #{multi_scale_feature_extractor.2} parent=11 // pred_region
        _
      $region16: #{multi_scale_feature_extractor.2} parent=11 // pred_fallthru
        _
    $region12: #{multi_scale_feature_extractor.2} parent=5 // pred_fallthru
      _
    %p143 = scmp.lt.s32.totalorder %s10, 4
    // Predicated region
    $region17: #{multi_scale_feature_extractor.2} parent=5 // pred_check
      %p144 = pneg %p143
    $region18: #{multi_scale_feature_extractor.2} parent=5 // pred_check_branch
      %146 = sbr.rel (%p144) target = $region20
    $region19: #{multi_scale_feature_extractor.2} parent=5 // pred_region
      // Predicated region
      $region21: #{multi_scale_feature_extractor.2} parent=19 // pred_check
        %p147 = pneg %p46
      $region22: #{multi_scale_feature_extractor.2} parent=19 // pred_check_branch
        %149 = sbr.rel (%p147) target = $region24
      $region23: #{multi_scale_feature_extractor.2} parent=19 // pred_region
        %s150 = smul.u32 %s17, 2
        %s151 = sadd.s32 %s150, %s18
        %p152 = scmp.lt.s32.totalorder %s151, 3
        %s153 = scalar_select %p152, %s151, 3
        %s154 = smul.addr %s153, 8
        %s155 = scalar_lea.vmem %s0, %s154
        %s156 = smul.u32 %s17, 2
        %s157 = sadd.s32 %s156, %s18
      $region24: #{multi_scale_feature_extractor.2} parent=19 // pred_fallthru
        _
    $region20: #{multi_scale_feature_extractor.2} parent=5 // pred_fallthru
      _
    %p158 = scmp.le.s32.totalorder 1, %s10
    %p159 = scmp.lt.s32.totalorder %s10, 5
    %p160 = pnand %p158, %p159
    %p161 = pneg %p160
    // Predicated region
    $region25: #{multi_scale_feature_extractor.2} parent=5 // pred_check
      _
    $region26: #{multi_scale_feature_extractor.2} parent=5 // pred_check_branch
      %163 = sbr.rel (%p160) target = $region28
    $region27: #{multi_scale_feature_extractor.2} parent=5 // pred_region
      %s164 = ssub.s32 %s10, 1
      %s165 = smul.u32 %s19, 2
      %s166 = sadd.s32 %s165, %s20
      %p167 = scmp.lt.s32.totalorder %s166, 3
      %s168 = scalar_select %p167, %s166, 3
      %s169 = smul.addr %s168, 8
      %s170 = scalar_lea.vmem %s0, %s169
      %p171 = pneg %p52
      %p172 = pneg %p49
      %p173 = pneg %p73
      %p174 = pneg %p70
      %p175 = pneg %p99
      %p176 = pneg %p96
      %p177 = scmp.lt.s32.totalorder %s19, 1
      %s178 = scalar_select %p177, %s19, 1
      %s179 = scalar_lea.vmem %s2, %s178
      %p180 = pneg %p125
      %p181 = pneg %p122
      %p182 = scmp.lt.s32.totalorder %s19, 1
      %s183 = scalar_select %p182, %s19, 1
      %s184 = scalar_lea.vmem %s3, %s183
      %s185 = smul.u32 %s19, 2
      %s186 = sadd.s32 %s185, %s20
      %p187 = scmp.lt.s32.totalorder %s186, 3
      %s188 = scalar_select %p187, %s186, 3
      %s189 = smul.addr %s188, 8
      %s190 = scalar_lea.vmem %s0, %s189
      %s191 = smul.u32 %s19, 2
      %s192 = sadd.s32 %s191, %s20
      %p193 = scmp.lt.s32.totalorder %s19, 1
      %s194 = scalar_select %p193, %s19, 1
      %s195 = scalar_lea.vmem %s2, %s194
      %p196 = scmp.lt.s32.totalorder %s19, 1
      %s197 = scalar_select %p196, %s19, 1
      %s198 = scalar_lea.vmem %s3, %s197
      %p199 = scmp.eq.s32.totalorder %s20, 0
      // Predicated region
      $region29: #{multi_scale_feature_extractor.2} parent=27 // pred_check
        %p200 = pneg %p199
      $region30: #{multi_scale_feature_extractor.2} parent=27 // pred_check_branch
        %202 = sbr.rel (%p200) target = $region32
      $region31: #{multi_scale_feature_extractor.2} parent=27 // pred_region
        %203 = vst [vmem:[%s195] sm:$0x1] 0.0
        %204 = vst [vmem:[%s198] sm:$0x1] 0.0
      $region32: #{multi_scale_feature_extractor.2} parent=27 // pred_fallthru
        _
      %v205 = vld [vmem:[%s190] sm:$0xff]
      %v206 = vld [vmem:[%s1] sm:$0xff]
      %v207 = vld [vmem:[%s1 + $0x8] sm:$0xff]
      %v208 = vld [vmem:[%s1 + $0x10] sm:$0xff]
      %v209 = vld [vmem:[%s1 + $0x18] sm:$0xff]
      %v210 = vld [vmem:[%s1 + $0x20] sm:$0xff]
      %v211 = vld [vmem:[%s1 + $0x28] sm:$0xff]
      %vm212 = vcmask 392192
      %v214 = vsel %vm212, %v205, 0
      %216 = vmatprep.subr.mxu0 0.0
      %217 = vmatpush1.msra.mxu0 %v206
      %218 = vmatprep.subr.mxu0 0.0
      %219 = vmatpush1.msra.mxu0 %v207
      %220 = vmatprep.subr.mxu0 0.0
      %221 = vmatpush1.msra.mxu0 %v208
      %222 = vmatprep.subr.mxu0 0.0
      %223 = vmatpush1.msra.mxu0 %v209
      %224 = vmatprep.subr.mxu0 0.0
      %225 = vmatpush1.msra.mxu0 %v210
      %226 = vmatprep.subr.mxu0 0.0
      %227 = vmatpush1.msra.mxu0 %v211
      %228 = vmatprep.subr.mxu0 0.0
      %229 = vmatpush1.msra.mxu0 0.0
      %230 = vmatprep.subr.mxu0 0.0
      %231 = vmatpush1.msra.mxu0 0.0
      %232 = vmatprep.subr.mxu0 0.0
      %233 = vmatpush1.msra.mxu0 0.0
      %234 = vmatprep.subr.mxu0 0.0
      %235 = vmatpush1.msra.mxu0 0.0
      %236 = vmatprep.subr.mxu0 0.0
      %237 = vmatpush1.msra.mxu0 0.0
      %238 = vmatprep.subr.mxu0 0.0
      %239 = vmatpush1.msra.mxu0 0.0
      %240 = vmatprep.subr.mxu0 0.0
      %241 = vmatpush1.msra.mxu0 0.0
      %242 = vmatprep.subr.mxu0 0.0
      %243 = vmatpush1.msra.mxu0 0.0
      %244 = vmatprep.subr.mxu0 0.0
      %245 = vmatpush1.msra.mxu0 0.0
      %246 = vmatprep.subr.mxu0 0.0
      %247 = vmatpush1.msra.mxu0 0.0
      %248 = vmatprep.subr.mxu0 0.0
      %249 = vmatpush1.msra.mxu0 0.0
      %250 = vmatprep.subr.mxu0 0.0
      %251 = vmatpush1.msra.mxu0 0.0
      %252 = vmatprep.subr.mxu0 0.0
      %253 = vmatpush1.msra.mxu0 0.0
      %254 = vmatprep.subr.mxu0 0.0
      %255 = vmatpush1.msra.mxu0 0.0
      %256 = vmatprep.subr.mxu0 0.0
      %257 = vmatpush1.msra.mxu0 0.0
      %258 = vmatprep.subr.mxu0 0.0
      %259 = vmatpush1.msra.mxu0 0.0
      %260 = vmatprep.subr.mxu0 0.0
      %261 = vmatpush1.msra.mxu0 0.0
      %262 = vmatprep.subr.mxu0 0.0
      %263 = vmatpush1.msra.mxu0 0.0
      %264 = vmatprep.subr.mxu0 0.0
      %265 = vmatpush1.msra.mxu0 0.0
      %266 = vmatprep.subr.mxu0 0.0
      %267 = vmatpush1.msra.mxu0 0.0
      %268 = vmatprep.subr.mxu0 0.0
      %269 = vmatpush1.msra.mxu0 0.0
      %270 = vmatprep.subr.mxu0 0.0
      %271 = vmatpush1.msra.mxu0 0.0
      %272 = vmatprep.subr.mxu0 0.0
      %273 = vmatpush1.msra.mxu0 0.0
      %274 = vmatprep.subr.mxu0 0.0
      %275 = vmatpush1.msra.mxu0 0.0
      %276 = vmatprep.subr.mxu0 0.0
      %277 = vmatpush1.msra.mxu0 0.0
      %278 = vmatprep.subr.mxu0 0.0
      %279 = vmatpush1.msra.mxu0 0.0
      %280 = vmatprep.mubr.f32.mxu0 0.0
      %281 = vmatmul.mubr.f32.gmra.mrb[0].mxu0 %v214
      %v282 = vpop.f32.mrb[0].mxu0
      %v283 = vadd.f32 0.0, %v282
      %v284 = vpop.f32.mrb[0].mxu0
      %285 = vdwg.mxu0
      %v286 = vld [vmem:[%s195] sm:$0x1]
      %v287 = vrot.slane %v283, 4
      %v288 = vadd.f32 %v283, %v287
      %v289 = vrot.slane %v288, 2
      %v290 = vadd.f32 %v288, %v289
      %v291 = vrot.slane %v290, 1
      %v292 = vadd.f32 %v290, %v291
      %v293 = vadd.f32 %v286, %v292
      %294 = vst [vmem:[%s195] sm:$0x1] %v293
      %v295 = vld [vmem:[%s198] sm:$0x1]
      %v296 = vmul.f32 %v283, %v283
      %v297 = vrot.slane %v296, 4
      %v298 = vadd.f32 %v296, %v297
      %v299 = vrot.slane %v298, 2
      %v300 = vadd.f32 %v298, %v299
      %v301 = vrot.slane %v300, 1
      %v302 = vadd.f32 %v300, %v301
      %v303 = vadd.f32 %v295, %v302
      %304 = vst [vmem:[%s198] sm:$0x1] %v303
      %p305 = scmp.lt.s32.totalorder %s19, 1
      %s306 = scalar_select %p305, %s19, 1
      %s307 = scalar_lea.vmem %s2, %s306
      %p308 = scmp.lt.s32.totalorder %s19, 1
      %s309 = scalar_select %p308, %s19, 1
      %s310 = scalar_lea.vmem %s3, %s309
      // Predicated region
      $region33: #{multi_scale_feature_extractor.2} parent=27 // pred_check
        %p311 = pneg %p96
      $region34: #{multi_scale_feature_extractor.2} parent=27 // pred_check_branch
        %313 = sbr.rel (%p311) target = $region36
      $region35: #{multi_scale_feature_extractor.2} parent=27 // pred_region
        _
      $region36: #{multi_scale_feature_extractor.2} parent=27 // pred_fallthru
        _
      // Predicated region
      $region37: #{multi_scale_feature_extractor.2} parent=27 // pred_check
        %p314 = pneg %p122
      $region38: #{multi_scale_feature_extractor.2} parent=27 // pred_check_branch
        %316 = sbr.rel (%p314) target = $region40
      $region39: #{multi_scale_feature_extractor.2} parent=27 // pred_region
        _
      $region40: #{multi_scale_feature_extractor.2} parent=27 // pred_fallthru
        _
    $region28: #{multi_scale_feature_extractor.2} parent=5 // pred_fallthru
      _
    %p317 = scmp.le.s32.totalorder 2, %s10
    // Predicated region
    $region41: #{multi_scale_feature_extractor.2} parent=5 // pred_check
      %p318 = pneg %p317
    $region42: #{multi_scale_feature_extractor.2} parent=5 // pred_check_branch
      %320 = sbr.rel (%p318) target = $region44
    $region43: #{multi_scale_feature_extractor.2} parent=5 // pred_region
      %s321 = ssub.s32 %s10, 2
      // Predicated region
      $region45: #{multi_scale_feature_extractor.2} parent=43 // pred_check
        %p322 = pneg %p102
      $region46: #{multi_scale_feature_extractor.2} parent=43 // pred_check_branch
        %324 = sbr.rel (%p322) target = $region48
      $region47: #{multi_scale_feature_extractor.2} parent=43 // pred_region
        %p325 = scmp.lt.s32.totalorder %s21, 1
        %s326 = scalar_select %p325, %s21, 1
        %s327 = scalar_lea.vmem %s2, %s326
      $region48: #{multi_scale_feature_extractor.2} parent=43 // pred_fallthru
        _
      // Predicated region
      $region49: #{multi_scale_feature_extractor.2} parent=43 // pred_check
        %p328 = pneg %p128
      $region50: #{multi_scale_feature_extractor.2} parent=43 // pred_check_branch
        %330 = sbr.rel (%p328) target = $region52
      $region51: #{multi_scale_feature_extractor.2} parent=43 // pred_region
        %p331 = scmp.lt.s32.totalorder %s21, 1
        %s332 = scalar_select %p331, %s21, 1
        %s333 = scalar_lea.vmem %s3, %s332
      $region52: #{multi_scale_feature_extractor.2} parent=43 // pred_fallthru
        _
    $region44: #{multi_scale_feature_extractor.2} parent=5 // pred_fallthru
      _
  $region6: #{multi_scale_feature_extractor.2} parent=0 // loop_footer
    %s14 = sadd.s32 1, %s10
  $region7: #{multi_scale_feature_extractor.2} parent=0 // loop_footer_branch
    %9 = sbr.rel target = $region3
  $region8: #{multi_scale_feature_extractor.2} parent=0 // loop_exit
    _

// kernel: multi_scale_feature_extractor.3
$region0: #{multi_scale_feature_extractor.3}
  #allocation0 [shape = 'u32[]', space=smem, size = 0x4, offset = 0x4, fixed_abs, tag = 'smem constant byte address 0x4 - core index']
  #allocation1 [shape = 'u32[144,128]{1,0:T(1,128)}', space=vmem, size = 0x12000, scoped, tag = 'internal scratch']
  %s0 = inlined_call_operand.vmem [shape: f32[32,48], index: 0, kind: input, shape index: {}]
  %s1 = inlined_call_operand.vmem [shape: f32[48,128], index: 1, kind: input, shape index: {}]
  %s2 = inlined_call_operand.vmem [shape: f32[1,128], index: 2, kind: input, shape index: {}]
  %s3 = inlined_call_operand.vmem [shape: f32[1,128], index: 3, kind: input, shape index: {}]
  %s4 = inlined_call_operand.vmem [shape: f32[32,128], index: 4, kind: output, shape index: {}]
  %s5 = sld [smem:[#allocation0]]
  $region49: #{multi_scale_feature_extractor.3} parent=0
    _
  %s7 = ssub.s32 1, %s5
  %s8 = scalar_select 0, %s7, %s5
  loop: start=0, step=1, limit=6
  $region2: #{multi_scale_feature_extractor.3} parent=0 // loop_pre_header
    _
  $region3: #{multi_scale_feature_extractor.3} parent=0 // loop_header
    %s10 = sphi 0, %s14
    %p11 = scmp.ge.s32.totalorder %s10, 6
    %s20 = sphi 0, %s22
    %s23 = sphi 0, %s20
    %s24 = sphi 0, %s23
    %s40 = sphi 0, %s24
    %s44 = sphi 0, %s44
    %s46 = sphi 0, %s44
    %s47 = sphi 0, %s46
    %s61 = sphi 0, %s47
    %s65 = sphi 0, %s65
    %s67 = sphi 0, %s65
    %s68 = sphi 0, %s67
    %s82 = sphi 0, %s68
    %s86 = sphi 0, %s86
    %s88 = sphi 0, %s86
    %s89 = sphi 0, %s88
    %s103 = sphi 0, %s89
    %s109 = sphi 0, %s111
    %s112 = sphi 0, %s109
    %s113 = sphi 0, %s112
    %s129 = sphi 0, %s113
  $region4: #{multi_scale_feature_extractor.3} parent=0 // loop_header_branch
    %13 = sbr.rel (%p11) target = $region8
  $region5: #{multi_scale_feature_extractor.3} parent=0 // loop_body
    %s15 = ssub.s32 %s10, 1
    %s16 = ssub.s32 %s10, 2
    %s17 = sadd.s32 %s10, 1
    %s18 = ssub.s32 %s10, %s17
    %p19 = scmp.eq.s32.totalorder %s18, 0
    %s21 = sadd.s32 %s20, 1
    %s22 = scalar_select %p19, %s20, %s21
    %p25 = pneg %p19
    %p26 = scmp.eq.s32.totalorder %s10, 3
    %p27 = por %p25, %p26
    %p28 = scmp.ne.s32.totalorder %s20, %s23
    %p29 = scmp.eq.s32.totalorder %s10, 0
    %p30 = por %p28, %p29
    %p31 = scmp.ne.s32.totalorder %s20, %s23
    %p32 = scmp.eq.s32.totalorder %s15, 3
    %p33 = por %p31, %p32
    %p34 = scmp.ne.s32.totalorder %s23, %s24
    %p35 = scmp.eq.s32.totalorder %s15, 0
    %p36 = por %p34, %p35
    %p37 = scmp.ne.s32.totalorder %s23, %s24
    %p38 = scmp.eq.s32.totalorder %s16, 3
    %p39 = por %p37, %p38
    %p41 = scmp.ne.s32.totalorder %s24, %s40
    %p42 = scmp.eq.s32.totalorder %s16, 0
    %p43 = por %p41, %p42
    %s45 = sadd.s32 %s44, 1
    %p48 = scmp.eq.s32.totalorder %s10, 3
    %p49 = scmp.ne.s32.totalorder %s44, %s46
    %p50 = scmp.eq.s32.totalorder %s10, 0
    %p51 = por %p49, %p50
    %p52 = scmp.ne.s32.totalorder %s44, %s46
    %p53 = scmp.eq.s32.totalorder %s15, 3
    %p54 = por %p52, %p53
    %p55 = scmp.ne.s32.totalorder %s46, %s47
    %p56 = scmp.eq.s32.totalorder %s15, 0
    %p57 = por %p55, %p56
    %p58 = scmp.ne.s32.totalorder %s46, %s47
    %p59 = scmp.eq.s32.totalorder %s16, 3
    %p60 = por %p58, %p59
    %p62 = scmp.ne.s32.totalorder %s47, %s61
    %p63 = scmp.eq.s32.totalorder %s16, 0
    %p64 = por %p62, %p63
    %s66 = sadd.s32 %s65, 1
    %p69 = scmp.eq.s32.totalorder %s10, 3
    %p70 = scmp.ne.s32.totalorder %s65, %s67
    %p71 = scmp.eq.s32.totalorder %s10, 0
    %p72 = por %p70, %p71
    %p73 = scmp.ne.s32.totalorder %s65, %s67
    %p74 = scmp.eq.s32.totalorder %s15, 3
    %p75 = por %p73, %p74
    %p76 = scmp.ne.s32.totalorder %s67, %s68
    %p77 = scmp.eq.s32.totalorder %s15, 0
    %p78 = por %p76, %p77
    %p79 = scmp.ne.s32.totalorder %s67, %s68
    %p80 = scmp.eq.s32.totalorder %s16, 3
    %p81 = por %p79, %p80
    %p83 = scmp.ne.s32.totalorder %s68, %s82
    %p84 = scmp.eq.s32.totalorder %s16, 0
    %p85 = por %p83, %p84
    %s87 = sadd.s32 %s86, 1
    %p90 = scmp.eq.s32.totalorder %s10, 3
    %p91 = scmp.ne.s32.totalorder %s86, %s88
    %p92 = scmp.eq.s32.totalorder %s10, 0
    %p93 = por %p91, %p92
    %p94 = scmp.ne.s32.totalorder %s86, %s88
    %p95 = scmp.eq.s32.totalorder %s15, 3
    %p96 = por %p94, %p95
    %p97 = scmp.ne.s32.totalorder %s88, %s89
    %p98 = scmp.eq.s32.totalorder %s15, 0
    %p99 = por %p97, %p98
    %p100 = scmp.ne.s32.totalorder %s88, %s89
    %p101 = scmp.eq.s32.totalorder %s16, 3
    %p102 = por %p100, %p101
    %p104 = scmp.ne.s32.totalorder %s89, %s103
    %p105 = scmp.eq.s32.totalorder %s16, 0
    %p106 = por %p104, %p105
    %s107 = ssub.s32 %s10, %s17
    %p108 = scmp.eq.s32.totalorder %s107, 0
    %s110 = sadd.s32 %s109, 1
    %s111 = scalar_select %p108, %s109, %s110
    %p114 = pneg %p108
    %p115 = scmp.eq.s32.totalorder %s10, 3
    %p116 = por %p114, %p115
    %p117 = scmp.ne.s32.totalorder %s109, %s112
    %p118 = scmp.eq.s32.totalorder %s10, 0
    %p119 = por %p117, %p118
    %p120 = scmp.ne.s32.totalorder %s109, %s112
    %p121 = scmp.eq.s32.totalorder %s15, 3
    %p122 = por %p120, %p121
    %p123 = scmp.ne.s32.totalorder %s112, %s113
    %p124 = scmp.eq.s32.totalorder %s15, 0
    %p125 = por %p123, %p124
    %p126 = scmp.ne.s32.totalorder %s112, %s113
    %p127 = scmp.eq.s32.totalorder %s16, 3
    %p128 = por %p126, %p127
    %p130 = scmp.ne.s32.totalorder %s113, %s129
    %p131 = scmp.eq.s32.totalorder %s16, 0
    %p132 = por %p130, %p131
    %p133 = scmp.le.s32.totalorder 1, %s10
    %p134 = scmp.lt.s32.totalorder %s10, 5
    %p135 = pnand %p133, %p134
    %p136 = pneg %p135
    // Predicated region
    $region9: #{multi_scale_feature_extractor.3} parent=5 // pred_check
      _
    $region10: #{multi_scale_feature_extractor.3} parent=5 // pred_check_branch
      %138 = sbr.rel (%p135) target = $region12
    $region11: #{multi_scale_feature_extractor.3} parent=5 // pred_region
      %s139 = ssub.s32 %s10, 1
      // Predicated region
      $region13: #{multi_scale_feature_extractor.3} parent=11 // pred_check
        %p140 = pneg %p57
      $region14: #{multi_scale_feature_extractor.3} parent=11 // pred_check_branch
        %142 = sbr.rel (%p140) target = $region16
      $region15: #{multi_scale_feature_extractor.3} parent=11 // pred_region
        _
      $region16: #{multi_scale_feature_extractor.3} parent=11 // pred_fallthru
        _
      // Predicated region
      $region17: #{multi_scale_feature_extractor.3} parent=11 // pred_check
        %p143 = pneg %p78
      $region18: #{multi_scale_feature_extractor.3} parent=11 // pred_check_branch
        %145 = sbr.rel (%p143) target = $region20
      $region19: #{multi_scale_feature_extractor.3} parent=11 // pred_region
        _
      $region20: #{multi_scale_feature_extractor.3} parent=11 // pred_fallthru
        _
      // Predicated region
      $region21: #{multi_scale_feature_extractor.3} parent=11 // pred_check
        %p146 = pneg %p99
      $region22: #{multi_scale_feature_extractor.3} parent=11 // pred_check_branch
        %148 = sbr.rel (%p146) target = $region24
      $region23: #{multi_scale_feature_extractor.3} parent=11 // pred_region
        _
      $region24: #{multi_scale_feature_extractor.3} parent=11 // pred_fallthru
        _
    $region12: #{multi_scale_feature_extractor.3} parent=5 // pred_fallthru
      _
    %p149 = scmp.lt.s32.totalorder %s10, 4
    // Predicated region
    $region25: #{multi_scale_feature_extractor.3} parent=5 // pred_check
      %p150 = pneg %p149
    $region26: #{multi_scale_feature_extractor.3} parent=5 // pred_check_branch
      %152 = sbr.rel (%p150) target = $region28
    $region27: #{multi_scale_feature_extractor.3} parent=5 // pred_region
      // Predicated region
      $region29: #{multi_scale_feature_extractor.3} parent=27 // pred_check
        %p153 = pneg %p30
      $region30: #{multi_scale_feature_extractor.3} parent=27 // pred_check_branch
        %155 = sbr.rel (%p153) target = $region32
      $region31: #{multi_scale_feature_extractor.3} parent=27 // pred_region
        %p156 = scmp.lt.s32.totalorder %s10, 3
        %s157 = scalar_select %p156, %s10, 3
        %s158 = smul.addr %s157, 8
        %s159 = scalar_lea.vmem %s0, %s158
      $region32: #{multi_scale_feature_extractor.3} parent=27 // pred_fallthru
        _
    $region28: #{multi_scale_feature_extractor.3} parent=5 // pred_fallthru
      _
    %p160 = scmp.le.s32.totalorder 1, %s10
    %p161 = scmp.lt.s32.totalorder %s10, 5
    %p162 = pnand %p160, %p161
    %p163 = pneg %p162
    // Predicated region
    $region33: #{multi_scale_feature_extractor.3} parent=5 // pred_check
      _
    $region34: #{multi_scale_feature_extractor.3} parent=5 // pred_check_branch
      %165 = sbr.rel (%p162) target = $region36
    $region35: #{multi_scale_feature_extractor.3} parent=5 // pred_region
      %s166 = ssub.s32 %s10, 1
      %p167 = scmp.lt.s32.totalorder %s15, 3
      %s168 = scalar_select %p167, %s15, 3
      %s169 = smul.addr %s168, 8
      %s170 = scalar_lea.vmem %s0, %s169
      %p171 = pneg %p36
      %p172 = pneg %p33
      %p173 = pneg %p57
      %p174 = pneg %p54
      %p175 = pneg %p78
      %p176 = pneg %p75
      %p177 = pneg %p99
      %p178 = pneg %p96
      %p179 = pneg %p125
      %p180 = pneg %p122
      %p181 = scmp.lt.s32.totalorder %s15, 3
      %s182 = scalar_select %p181, %s15, 3
      %s183 = smul.addr %s182, 8
      %s184 = scalar_lea.vmem %s4, %s183
      %p185 = scmp.lt.s32.totalorder %s15, 3
      %s186 = scalar_select %p185, %s15, 3
      %s187 = smul.addr %s186, 8
      %s188 = scalar_lea.vmem %s0, %s187
      %p189 = scmp.lt.s32.totalorder %s15, 3
      %s190 = scalar_select %p189, %s15, 3
      %s191 = smul.addr %s190, 8
      %s192 = scalar_lea.vmem %s4, %s191
      %v193 = vld [vmem:[%s188] sm:$0xff]
      %v194 = vld [vmem:[%s1] sm:$0xff]
      %v195 = vld [vmem:[%s1 + $0x8] sm:$0xff]
      %v196 = vld [vmem:[%s1 + $0x10] sm:$0xff]
      %v197 = vld [vmem:[%s1 + $0x18] sm:$0xff]
      %v198 = vld [vmem:[%s1 + $0x20] sm:$0xff]
      %v199 = vld [vmem:[%s1 + $0x28] sm:$0xff]
      %vm200 = vcmask 392192
      %v202 = vsel %vm200, %v193, 0
      %204 = vmatprep.subr.mxu0 0.0
      %205 = vmatpush1.msra.mxu0 %v194
      %206 = vmatprep.subr.mxu0 0.0
      %207 = vmatpush1.msra.mxu0 %v195
      %208 = vmatprep.subr.mxu0 0.0
      %209 = vmatpush1.msra.mxu0 %v196
      %210 = vmatprep.subr.mxu0 0.0
      %211 = vmatpush1.msra.mxu0 %v197
      %212 = vmatprep.subr.mxu0 0.0
      %213 = vmatpush1.msra.mxu0 %v198
      %214 = vmatprep.subr.mxu0 0.0
      %215 = vmatpush1.msra.mxu0 %v199
      %216 = vmatprep.subr.mxu0 0.0
      %217 = vmatpush1.msra.mxu0 0.0
      %218 = vmatprep.subr.mxu0 0.0
      %219 = vmatpush1.msra.mxu0 0.0
      %220 = vmatprep.subr.mxu0 0.0
      %221 = vmatpush1.msra.mxu0 0.0
      %222 = vmatprep.subr.mxu0 0.0
      %223 = vmatpush1.msra.mxu0 0.0
      %224 = vmatprep.subr.mxu0 0.0
      %225 = vmatpush1.msra.mxu0 0.0
      %226 = vmatprep.subr.mxu0 0.0
      %227 = vmatpush1.msra.mxu0 0.0
      %228 = vmatprep.subr.mxu0 0.0
      %229 = vmatpush1.msra.mxu0 0.0
      %230 = vmatprep.subr.mxu0 0.0
      %231 = vmatpush1.msra.mxu0 0.0
      %232 = vmatprep.subr.mxu0 0.0
      %233 = vmatpush1.msra.mxu0 0.0
      %234 = vmatprep.subr.mxu0 0.0
      %235 = vmatpush1.msra.mxu0 0.0
      %236 = vmatprep.subr.mxu0 0.0
      %237 = vmatpush1.msra.mxu0 0.0
      %238 = vmatprep.subr.mxu0 0.0
      %239 = vmatpush1.msra.mxu0 0.0
      %240 = vmatprep.subr.mxu0 0.0
      %241 = vmatpush1.msra.mxu0 0.0
      %242 = vmatprep.subr.mxu0 0.0
      %243 = vmatpush1.msra.mxu0 0.0
      %244 = vmatprep.subr.mxu0 0.0
      %245 = vmatpush1.msra.mxu0 0.0
      %246 = vmatprep.subr.mxu0 0.0
      %247 = vmatpush1.msra.mxu0 0.0
      %248 = vmatprep.subr.mxu0 0.0
      %249 = vmatpush1.msra.mxu0 0.0
      %250 = vmatprep.subr.mxu0 0.0
      %251 = vmatpush1.msra.mxu0 0.0
      %252 = vmatprep.subr.mxu0 0.0
      %253 = vmatpush1.msra.mxu0 0.0
      %254 = vmatprep.subr.mxu0 0.0
      %255 = vmatpush1.msra.mxu0 0.0
      %256 = vmatprep.subr.mxu0 0.0
      %257 = vmatpush1.msra.mxu0 0.0
      %258 = vmatprep.subr.mxu0 0.0
      %259 = vmatpush1.msra.mxu0 0.0
      %260 = vmatprep.subr.mxu0 0.0
      %261 = vmatpush1.msra.mxu0 0.0
      %262 = vmatprep.subr.mxu0 0.0
      %263 = vmatpush1.msra.mxu0 0.0
      %264 = vmatprep.subr.mxu0 0.0
      %265 = vmatpush1.msra.mxu0 0.0
      %266 = vmatprep.subr.mxu0 0.0
      %267 = vmatpush1.msra.mxu0 0.0
      %268 = vmatprep.mubr.f32.mxu0 0.0
      %269 = vmatmul.mubr.f32.gmra.mrb[0].mxu0 %v202
      %v270 = vpop.f32.mrb[0].mxu0
      %v271 = vadd.f32 0.0, %v270
      %v272 = vpop.f32.mrb[0].mxu0
      %273 = vdwg.mxu0
      %v274 = vld [vmem:[%s2] sm:$0x1]
      %v276 = vlaneseq
      %v277 = vshrl.u32 %v276, 7
      %v278 = vsub.s32 0, %v277
      %v279 = vrot.slane %v274, %v278
      %v281 = vmul.f32 %v271, %v279
      %v282 = vld [vmem:[%s3] sm:$0x1]
      %v284 = vlaneseq
      %v285 = vshrl.u32 %v284, 7
      %v286 = vsub.s32 0, %v285
      %v287 = vrot.slane %v282, %v286
      %v289 = vadd.f32 %v281, %v287
      %290 = vst [vmem:[%s192] sm:$0xff] %v289
      %p291 = scmp.lt.s32.totalorder %s15, 3
      %s292 = scalar_select %p291, %s15, 3
      %s293 = smul.addr %s292, 8
      %s294 = scalar_lea.vmem %s4, %s293
      // Predicated region
      $region37: #{multi_scale_feature_extractor.3} parent=35 // pred_check
        %p295 = pneg %p122
      $region38: #{multi_scale_feature_extractor.3} parent=35 // pred_check_branch
        %297 = sbr.rel (%p295) target = $region40
      $region39: #{multi_scale_feature_extractor.3} parent=35 // pred_region
        _
      $region40: #{multi_scale_feature_extractor.3} parent=35 // pred_fallthru
        _
    $region36: #{multi_scale_feature_extractor.3} parent=5 // pred_fallthru
      _
    %p298 = scmp.le.s32.totalorder 2, %s10
    // Predicated region
    $region41: #{multi_scale_feature_extractor.3} parent=5 // pred_check
      %p299 = pneg %p298
    $region42: #{multi_scale_feature_extractor.3} parent=5 // pred_check_branch
      %301 = sbr.rel (%p299) target = $region44
    $region43: #{multi_scale_feature_extractor.3} parent=5 // pred_region
      %s302 = ssub.s32 %s10, 2
      // Predicated region
      $region45: #{multi_scale_feature_extractor.3} parent=43 // pred_check
        %p303 = pneg %p128
      $region46: #{multi_scale_feature_extractor.3} parent=43 // pred_check_branch
        %305 = sbr.rel (%p303) target = $region48
      $region47: #{multi_scale_feature_extractor.3} parent=43 // pred_region
        %p306 = scmp.lt.s32.totalorder %s16, 3
        %s307 = scalar_select %p306, %s16, 3
        %s308 = smul.addr %s307, 8
        %s309 = scalar_lea.vmem %s4, %s308
      $region48: #{multi_scale_feature_extractor.3} parent=43 // pred_fallthru
        _
    $region44: #{multi_scale_feature_extractor.3} parent=5 // pred_fallthru
      _
  $region6: #{multi_scale_feature_extractor.3} parent=0 // loop_footer
    %s14 = sadd.s32 1, %s10
  $region7: #{multi_scale_feature_extractor.3} parent=0 // loop_footer_branch
    %9 = sbr.rel target = $region3
  $region8: #{multi_scale_feature_extractor.3} parent=0 // loop_exit
    _

</llo_original>
